<compile_context>
chip_gen: v5e
topology: v5e:2x2
jax: 0.10.0
libtpu: 0.0.40
codegen_flags: <defaults>
</compile_context>

<pallas_src>
import jax
import jax.numpy as jnp
from jax import lax
from jax.experimental import pallas as pl
from jax.experimental.pallas import tpu as pltpu


def _round_up(x: int, m: int) -> int:
    return ((x + m - 1) // m) * m


def _make_mlp_kernel(num_linear_layers: int,
                     *,
                     negative_slope: float,
                     matmul_dtype,
                     sub_tile: int,
                     num_sub: int):
    """Kernel computing `num_linear_layers` Linear layers in transposed layout.

    LeakyReLU after every layer except the last, matching
    CouplingNetwork.forward. Activations ride the lane axis (features on
    sublanes, batch on lanes). If num_sub > 1 the bt-wide block is processed
    in `num_sub` lane sub-tiles of width `sub_tile` so per-layer
    intermediates fit in the vreg file.
    """

    def kernel(*refs):
        x_ref = refs[0]                 # (input_dim,  bt)
        o_ref = refs[-1]                # (output_dim, bt)
        param_refs = refs[1:-1]         # alternating (w, b) pairs
        assert len(param_refs) == 2 * num_linear_layers

        # Weights/biases are tiny and VMEM-resident; load once per grid step.
        ws = [param_refs[2 * i][...] for i in range(num_linear_layers)]
        bs = [param_refs[2 * i + 1][...] for i in range(num_linear_layers)]

        def compute(h):
            for i in range(num_linear_layers):
                rhs = h if matmul_dtype is None else h.astype(matmul_dtype)
                # MXU matmul, f32 accumulation; bias/activation in f32.
                h = jnp.dot(ws[i], rhs, preferred_element_type=jnp.float32) + bs[i]
                if i < num_linear_layers - 1:
                    h = jnp.where(h > 0, h, negative_slope * h)  # LeakyReLU
            return h

        if num_sub == 1:
            o_ref[...] = compute(x_ref[...]).astype(o_ref.dtype)
        else:
            def body(j, carry):
                start = pl.multiple_of(j * sub_tile, sub_tile)
                h = compute(x_ref[:, pl.ds(start, sub_tile)])
                o_ref[:, pl.ds(start, sub_tile)] = h.astype(o_ref.dtype)
                return carry
            lax.fori_loop(0, num_sub, body, 0, unroll=False)

    return kernel


def coupling_network_forward(x, params, *,
                             batch_tile=8192,
                             lane_subtile=1024,
                             matmul_dtype=None,
                             negative_slope=0.01,
                             transposed_io=False,
                             out_dtype=None):
    """CouplingNetwork forward pass as one fused Pallas TPU kernel.

    Args:
      x: (batch, input_dim) array, or (input_dim, batch) if transposed_io.
      params: list of (W, b), PyTorch nn.Linear layout: W (out_dim, in_dim),
              b (out_dim,).
      batch_tile: target batch columns per grid step (rounded to a multiple
              of 128; clamped so grid >= 2 when batch >= 256 for megacore).
              Sweep 4096..16384 on v6e/v7x; ~2048..4096 on v5e.
      lane_subtile: in-kernel lane sub-tile width (keeps intermediates in
              vregs for large tiles).
      matmul_dtype: e.g. jnp.bfloat16 -> bf16 MXU inputs AND bf16 x stream,
              f32 accumulation (looser precision). None = keep f32.
      negative_slope: LeakyReLU slope (PyTorch default 0.01).
      transposed_io: if True, take/return (feature, batch) arrays and skip
              the wrapper transposes (use when chaining coupling layers).
      out_dtype: output dtype; defaults to x's dtype.

    Returns:
      (batch, output_dim), or (output_dim, batch) if transposed_io.
    """
    if transposed_io:
        input_dim, batch = x.shape
        xt = x
    else:
        batch, input_dim = x.shape
        xt = x.T                      # one transpose, wrapper-side

    num_layers = len(params)
    output_dim = params[-1][0].shape[0]
    result_dtype = out_dtype if out_dtype is not None else x.dtype

    # ---- tile selection -----------------------------------------------------
    bt = _round_up(max(128, min(batch_tile, batch)), 128)
    if batch >= 256:
        # Keep grid >= 2 so dimension_semantics=("parallel",) can shard the
        # grid across both v7x TensorCores.
        bt = min(bt, _round_up(pl.cdiv(batch, 2), 128))
    grid = (pl.cdiv(batch, bt),)       # no wrapper pad; final block is masked

    # In-kernel lane sub-tiling (only when it divides the block evenly).
    sub_target = max(128, _round_up(min(lane_subtile, bt), 128))
    if bt % sub_target == 0 and bt // sub_target > 1:
        sub_tile, num_sub = sub_target, bt // sub_target
    else:
        sub_tile, num_sub = bt, 1

    # Fold the bf16 cast of x into the wrapper copy (halves x DMA bytes).
    if matmul_dtype is not None and xt.dtype != matmul_dtype:
        xt = xt.astype(matmul_dtype)

    kernel = _make_mlp_kernel(num_layers,
                              negative_slope=negative_slope,
                              matmul_dtype=matmul_dtype,
                              sub_tile=sub_tile,
                              num_sub=num_sub)

    # ---- specs --------------------------------------------------------------
    flat_args = []
    in_specs = [
        pl.BlockSpec((input_dim, bt), lambda i: (0, i)),   # x^T tiled on lanes
    ]
    # TODO(synk): optionally concatenate the tiny per-layer params into one
    # packed buffer to cut per-call DMA-descriptor/launch overhead.
    for (w, b) in params:
        w_arg = w if matmul_dtype is None else w.astype(matmul_dtype)
        flat_args.append(w_arg)
        in_specs.append(pl.BlockSpec(w_arg.shape, lambda i: (0, 0)))
        b2 = b.reshape(-1, 1).astype(jnp.float32)
        flat_args.append(b2)
        in_specs.append(pl.BlockSpec(b2.shape, lambda i: (0, 0)))

    out_spec = pl.BlockSpec((output_dim, bt), lambda i: (0, i))

    # ---- VMEM budget (only override the scoped default if we actually need to)
    x_bytes = jnp.dtype(xt.dtype).itemsize
    o_bytes = jnp.dtype(result_dtype).itemsize
    param_bytes = sum(w.size * 4 + b.size * 4 for (w, b) in params)
    est = (2 * input_dim * bt * x_bytes          # x double-buffer
           + 2 * output_dim * bt * o_bytes       # out double-buffer
           + param_bytes
           + 4 * sub_tile * max(w.shape[0] for (w, _) in params) * 4)  # live h
    vmem_limit = None
    if est > (24 << 20):
        vmem_limit = int(min(2 * est, 60 << 20))   # v7x physical VMEM is 64 MiB

    fn = pl.pallas_call(
        kernel,
        out_shape=jax.ShapeDtypeStruct((output_dim, batch), result_dtype),
        grid_spec=pltpu.PrefetchScalarGridSpec(
            num_scalar_prefetch=0,
            grid=grid,
            in_specs=in_specs,
            out_specs=out_spec,
        ),
        compiler_params=pltpu.CompilerParams(
            dimension_semantics=("parallel",),
            vmem_limit_bytes=vmem_limit,
        ),
    )
    out_t = fn(xt, *flat_args)                     # (output_dim, batch)
    return out_t if transposed_io else out_t.T     # (batch, output_dim)


def init_coupling_network_params(key, input_dim, output_dim, hidden_dim,
                                 num_hidden_layers):
    """Deterministic synthetic init mirroring CouplingNetwork.__init__.

    Returns list of (W, b) with W shaped (out_dim, in_dim) — identical to
    PyTorch's nn.Linear.weight layout.
    """
    dims = [input_dim] + [hidden_dim] * num_hidden_layers + [output_dim]
    params = []
    for i in range(len(dims) - 1):
        fan_in, fan_out = dims[i], dims[i + 1]
        key, wk, bk = jax.random.split(key, 3)
        bound = 1.0 / jnp.sqrt(fan_in)
        w = jax.random.uniform(wk, (fan_out, fan_in), jnp.float32, -bound, bound)
        b = jax.random.uniform(bk, (fan_out,), jnp.float32, -bound, bound)
        params.append((w, b))
    return params


def _reference_forward(x, params, negative_slope=0.01):
    h = x
    for i, (w, b) in enumerate(params):
        h = h @ w.T + b
        if i < len(params) - 1:
            h = jnp.where(h > 0, h, negative_slope * h)
    return h


if __name__ == "__main__":
    # Small shapes consistent with the module:
    #   input_dim=4, output_dim=4, hidden_dim=32, num_hidden_layers=2
    input_dim, output_dim, hidden_dim, num_hidden_layers = 4, 4, 32, 2

    key = jax.random.PRNGKey(0)
    key, xk, xk2 = jax.random.split(key, 3)
    params = init_coupling_network_params(
        key, input_dim, output_dim, hidden_dim, num_hidden_layers)

    # --- small batch (partial single block, batch=16) ---
    batch = 16
    x = jax.random.normal(xk, (batch, input_dim), jnp.float32)
    ref = _reference_forward(x, params)

    out = jax.block_until_ready(coupling_network_forward(x, params))
    assert out.shape == (batch, output_dim)
    assert jnp.allclose(out, ref, atol=1e-5, rtol=1e-5), "f32 mismatch (small batch)"

    # transposed_io path (skips wrapper transposes when chained in a flow).
    out_t = jax.block_until_ready(
        coupling_network_forward(x.T, params, transposed_io=True))
    assert out_t.shape == (output_dim, batch)
    assert jnp.allclose(out_t.T, ref, atol=1e-5, rtol=1e-5), "transposed_io mismatch"

    # --- moderate batch, not divisible by the tile: grid >= 2 + masked final block ---
    batch2 = 2000
    x2 = jax.random.normal(xk2, (batch2, input_dim), jnp.float32)
    ref2 = _reference_forward(x2, params)

    out2 = jax.block_until_ready(coupling_network_forward(x2, params))
    assert out2.shape == (batch2, output_dim)
    assert jnp.allclose(out2, ref2, atol=1e-5, rtol=1e-5), "f32 mismatch (batch=2000)"

    # bf16-on-MXU / bf16-stream path: f32 accumulate, looser tolerance.
    out2_bf16 = jax.block_until_ready(
        coupling_network_forward(x2, params, matmul_dtype=jnp.bfloat16))
    assert out2_bf16.shape == (batch2, output_dim)
    assert jnp.allclose(out2_bf16, ref2, atol=1e-1, rtol=1e-1), "bf16 mismatch"

    print("KERNEL_OK")
</pallas_src>

<mosaic_0001>
module attributes {stable_mosaic.version = 11 : i64} {
  func.func @kernel(%arg0: i32, %arg1: memref<4x128xf32, #tpu.memory_space<vmem>>, %arg2: memref<32x4xf32, #tpu.memory_space<vmem>>, %arg3: memref<32x1xf32, #tpu.memory_space<vmem>>, %arg4: memref<32x32xf32, #tpu.memory_space<vmem>>, %arg5: memref<32x1xf32, #tpu.memory_space<vmem>>, %arg6: memref<4x32xf32, #tpu.memory_space<vmem>>, %arg7: memref<4x1xf32, #tpu.memory_space<vmem>>, %arg8: memref<4x128xf32, #tpu.memory_space<vmem>>) attributes {dimension_semantics = [#tpu.dimension_semantics<parallel>], iteration_bounds = array<i64: 1>, scalar_prefetch = 0 : i64, scratch_operands = 0 : i64, tpu.core_type = #tpu.core_type<tc>, window_params = [{transform_indices = @transform_0, window_bounds = array<i64: 4, 128>}, {pipeline_mode = #tpu.pipeline_mode<synchronous>, transform_indices = @transform_1, window_bounds = array<i64: 32, 4>}, {pipeline_mode = #tpu.pipeline_mode<synchronous>, transform_indices = @transform_2, window_bounds = array<i64: 32, 1>}, {pipeline_mode = #tpu.pipeline_mode<synchronous>, transform_indices = @transform_3, window_bounds = array<i64: 32, 32>}, {pipeline_mode = #tpu.pipeline_mode<synchronous>, transform_indices = @transform_4, window_bounds = array<i64: 32, 1>}, {pipeline_mode = #tpu.pipeline_mode<synchronous>, transform_indices = @transform_5, window_bounds = array<i64: 4, 32>}, {pipeline_mode = #tpu.pipeline_mode<synchronous>, transform_indices = @transform_6, window_bounds = array<i64: 4, 1>}, {transform_indices = @transform_7, window_bounds = array<i64: 4, 128>}]} {
    %c0 = arith.constant 0 : index
    %c0_0 = arith.constant 0 : index
    %0 = vector.load %arg2[%c0, %c0_0] : memref<32x4xf32, #tpu.memory_space<vmem>>, vector<32x4xf32>
    %c0_1 = arith.constant 0 : index
    %c0_2 = arith.constant 0 : index
    %1 = vector.load %arg4[%c0_1, %c0_2] : memref<32x32xf32, #tpu.memory_space<vmem>>, vector<32x32xf32>
    %c0_3 = arith.constant 0 : index
    %c0_4 = arith.constant 0 : index
    %2 = vector.load %arg6[%c0_3, %c0_4] : memref<4x32xf32, #tpu.memory_space<vmem>>, vector<4x32xf32>
    %c0_5 = arith.constant 0 : index
    %c0_6 = arith.constant 0 : index
    %3 = vector.load %arg3[%c0_5, %c0_6] : memref<32x1xf32, #tpu.memory_space<vmem>>, vector<32x1xf32>
    %c0_7 = arith.constant 0 : index
    %c0_8 = arith.constant 0 : index
    %4 = vector.load %arg5[%c0_7, %c0_8] : memref<32x1xf32, #tpu.memory_space<vmem>>, vector<32x1xf32>
    %c0_9 = arith.constant 0 : index
    %c0_10 = arith.constant 0 : index
    %5 = vector.load %arg7[%c0_9, %c0_10] : memref<4x1xf32, #tpu.memory_space<vmem>>, vector<4x1xf32>
    %c0_11 = arith.constant 0 : index
    %c0_12 = arith.constant 0 : index
    %6 = vector.load %arg1[%c0_11, %c0_12] : memref<4x128xf32, #tpu.memory_space<vmem>>, vector<4x128xf32>
    %cst = arith.constant dense<0.000000e+00> : vector<32x128xf32>
    %7 = tpu.matmul %0, %6, %cst {dimension_numbers = #tpu.dot_dimension_numbers<[1], [0], [0], [1], [0, 0, 1, 1], [], []>} : vector<32x4xf32>, vector<4x128xf32>, vector<32x128xf32> -> vector<32x128xf32>
    %8 = vector.broadcast %3 : vector<32x1xf32> to vector<32x128xf32>
    %9 = arith.addf %7, %8 : vector<32x128xf32>
    %cst_13 = arith.constant 0.000000e+00 : f32
    %10 = vector.broadcast %cst_13 : f32 to vector<32x128xf32>
    %11 = arith.cmpf ogt, %9, %10 : vector<32x128xf32>
    %cst_14 = arith.constant 0.00999999977 : f32
    %12 = vector.broadcast %cst_14 : f32 to vector<32x128xf32>
    %13 = arith.mulf %12, %9 : vector<32x128xf32>
    %14 = arith.select %11, %9, %13 : vector<32x128xi1>, vector<32x128xf32>
    %cst_15 = arith.constant dense<0.000000e+00> : vector<32x128xf32>
    %15 = tpu.matmul %1, %14, %cst_15 {dimension_numbers = #tpu.dot_dimension_numbers<[1], [0], [0], [1], [0, 0, 1, 1], [], []>} : vector<32x32xf32>, vector<32x128xf32>, vector<32x128xf32> -> vector<32x128xf32>
    %16 = vector.broadcast %4 : vector<32x1xf32> to vector<32x128xf32>
    %17 = arith.addf %15, %16 : vector<32x128xf32>
    %cst_16 = arith.constant 0.000000e+00 : f32
    %18 = vector.broadcast %cst_16 : f32 to vector<32x128xf32>
    %19 = arith.cmpf ogt, %17, %18 : vector<32x128xf32>
    %cst_17 = arith.constant 0.00999999977 : f32
    %20 = vector.broadcast %cst_17 : f32 to vector<32x128xf32>
    %21 = arith.mulf %20, %17 : vector<32x128xf32>
    %22 = arith.select %19, %17, %21 : vector<32x128xi1>, vector<32x128xf32>
    %cst_18 = arith.constant dense<0.000000e+00> : vector<4x128xf32>
    %23 = tpu.matmul %2, %22, %cst_18 {dimension_numbers = #tpu.dot_dimension_numbers<[1], [0], [0], [1], [0, 0, 1, 1], [], []>} : vector<4x32xf32>, vector<32x128xf32>, vector<4x128xf32> -> vector<4x128xf32>
    %24 = vector.broadcast %5 : vector<4x1xf32> to vector<4x128xf32>
    %25 = arith.addf %23, %24 : vector<4x128xf32>
    %c0_19 = arith.constant 0 : index
    %c0_20 = arith.constant 0 : index
    %26 = vector.load %arg8[%c0_19, %c0_20] : memref<4x128xf32, #tpu.memory_space<vmem>>, vector<4x128xf32>
    tpu.vector_store %arg8[%c0_19, %c0_20], %25 {strides = array<i32>} : memref<4x128xf32, #tpu.memory_space<vmem>>, vector<4x128xf32>,
    return
  }
  func.func @transform_0(%arg0: i32) -> (i32, i32) {
    %c0_i32 = arith.constant 0 : i32
    %c0_i32_0 = arith.constant 0 : i32
    return %c0_i32, %arg0 : i32, i32
  }
  func.func @transform_1(%arg0: i32) -> (i32, i32) {
    %c0_i32 = arith.constant 0 : i32
    %c0_i32_0 = arith.constant 0 : i32
    %c0_i32_1 = arith.constant 0 : i32
    return %c0_i32, %c0_i32_0 : i32, i32
  }
  func.func @transform_2(%arg0: i32) -> (i32, i32) {
    %c0_i32 = arith.constant 0 : i32
    %c0_i32_0 = arith.constant 0 : i32
    %c0_i32_1 = arith.constant 0 : i32
    return %c0_i32, %c0_i32_0 : i32, i32
  }
  func.func @transform_3(%arg0: i32) -> (i32, i32) {
    %c0_i32 = arith.constant 0 : i32
    %c0_i32_0 = arith.constant 0 : i32
    %c0_i32_1 = arith.constant 0 : i32
    return %c0_i32, %c0_i32_0 : i32, i32
  }
  func.func @transform_4(%arg0: i32) -> (i32, i32) {
    %c0_i32 = arith.constant 0 : i32
    %c0_i32_0 = arith.constant 0 : i32
    %c0_i32_1 = arith.constant 0 : i32
    return %c0_i32, %c0_i32_0 : i32, i32
  }
  func.func @transform_5(%arg0: i32) -> (i32, i32) {
    %c0_i32 = arith.constant 0 : i32
    %c0_i32_0 = arith.constant 0 : i32
    %c0_i32_1 = arith.constant 0 : i32
    return %c0_i32, %c0_i32_0 : i32, i32
  }
  func.func @transform_6(%arg0: i32) -> (i32, i32) {
    %c0_i32 = arith.constant 0 : i32
    %c0_i32_0 = arith.constant 0 : i32
    %c0_i32_1 = arith.constant 0 : i32
    return %c0_i32, %c0_i32_0 : i32, i32
  }
  func.func @transform_7(%arg0: i32) -> (i32, i32) {
    %c0_i32 = arith.constant 0 : i32
    %c0_i32_0 = arith.constant 0 : i32
    return %c0_i32, %arg0 : i32, i32
  }
}

</mosaic_0001>

<llo_original>
// kernel: tpu_custom_call.1
$region0: #{tpu_custom_call.1}
  #allocation0 [shape = 'u32[]', space=smem, size = 0x4, offset = 0x4, fixed_abs, tag = 'smem constant byte address 0x4 - core index']
  #allocation1 [shape = 'u32[72,128]{1,0:T(1,128)}', space=vmem, size = 0x9000, scoped, tag = 'internal scratch']
  %s0 = inlined_call_operand.vmem [shape: f32[4,16], index: 0, kind: input, shape index: {}]
  %s1 = inlined_call_operand.vmem [shape: f32[32,4], index: 1, kind: input, shape index: {}]
  %s2 = inlined_call_operand.vmem [shape: f32[32,1], index: 2, kind: input, shape index: {}]
  %s3 = inlined_call_operand.vmem [shape: f32[32,32], index: 3, kind: input, shape index: {}]
  %s4 = inlined_call_operand.vmem [shape: f32[32,1], index: 4, kind: input, shape index: {}]
  %s5 = inlined_call_operand.vmem [shape: f32[4,32], index: 5, kind: input, shape index: {}]
  %s6 = inlined_call_operand.vmem [shape: f32[4,1], index: 6, kind: input, shape index: {}]
  %s7 = inlined_call_operand.hbm [shape: f32[4,16], index: 7, kind: output, shape index: {}]
  %s8 = sld [smem:[#allocation0]]
  $region38: #{tpu_custom_call.1} parent=0
    _
  %s10 = ssub.s32 1, %s8
  %s11 = scalar_select 0, %s10, %s8
  $region1: #{tpu_custom_call.1} parent=0
    #allocation2 [shape = 'u8[2048]{0}', space=vmem, size = 0x800, scoped, tag = 'output window, operand 0, single buffered']
    #allocation3 [shape = 's32[1]{0}', space=sflag, size = 0x4, scoped, tag = 'scoped memory for tpu_custom_call.1']
    %12 = vsyncpa [#allocation3], 0
    // Predicated region
    $region2: #{tpu_custom_call.1} parent=1 // pred_check
      _
    $region3: #{tpu_custom_call.1} parent=1 // pred_check_branch
      %14 = sbr.rel (0) target = $region5
    $region4: #{tpu_custom_call.1} parent=1 // pred_region
      _
    $region5: #{tpu_custom_call.1} parent=1 // pred_fallthru
      _
    // Predicated region
    $region6: #{tpu_custom_call.1} parent=1 // pred_check
      _
    $region7: #{tpu_custom_call.1} parent=1 // pred_check_branch
      %16 = sbr.rel (0) target = $region9
    $region8: #{tpu_custom_call.1} parent=1 // pred_region
      _
    $region9: #{tpu_custom_call.1} parent=1 // pred_fallthru
      _
    // Predicated region
    $region10: #{tpu_custom_call.1} parent=1 // pred_check
      _
    $region11: #{tpu_custom_call.1} parent=1 // pred_check_branch
      %18 = sbr.rel (0) target = $region13
    $region12: #{tpu_custom_call.1} parent=1 // pred_region
      _
    $region13: #{tpu_custom_call.1} parent=1 // pred_fallthru
      _
    // Predicated region
    $region14: #{tpu_custom_call.1} parent=1 // pred_check
      _
    $region15: #{tpu_custom_call.1} parent=1 // pred_check_branch
      %20 = sbr.rel (0) target = $region17
    $region16: #{tpu_custom_call.1} parent=1 // pred_region
      _
    $region17: #{tpu_custom_call.1} parent=1 // pred_fallthru
      _
    // Predicated region
    $region18: #{tpu_custom_call.1} parent=1 // pred_check
      _
    $region19: #{tpu_custom_call.1} parent=1 // pred_check_branch
      %22 = sbr.rel (0) target = $region21
    $region20: #{tpu_custom_call.1} parent=1 // pred_region
      _
    $region21: #{tpu_custom_call.1} parent=1 // pred_fallthru
      _
    // Predicated region
    $region22: #{tpu_custom_call.1} parent=1 // pred_check
      _
    $region23: #{tpu_custom_call.1} parent=1 // pred_check_branch
      %24 = sbr.rel (0) target = $region25
    $region24: #{tpu_custom_call.1} parent=1 // pred_region
      _
    $region25: #{tpu_custom_call.1} parent=1 // pred_fallthru
      _
    // Predicated region
    $region26: #{tpu_custom_call.1} parent=1 // pred_check
      _
    $region27: #{tpu_custom_call.1} parent=1 // pred_check_branch
      %26 = sbr.rel (0) target = $region29
    $region28: #{tpu_custom_call.1} parent=1 // pred_region
      _
    $region29: #{tpu_custom_call.1} parent=1 // pred_fallthru
      _
    %v27 = vld [vmem:[%s1] sm:$0xff]
    %v28 = vld [vmem:[%s1 + $0x8] sm:$0xff]
    %v29 = vld [vmem:[%s1 + $0x10] sm:$0xff]
    %v30 = vld [vmem:[%s1 + $0x18] sm:$0xff]
    %v31 = vld [vmem:[%s3] sm:$0xff]
    %v32 = vld [vmem:[%s3 + $0x8] sm:$0xff]
    %v33 = vld [vmem:[%s3 + $0x10] sm:$0xff]
    %v34 = vld [vmem:[%s3 + $0x18] sm:$0xff]
    %v35 = vld [vmem:[%s5] sm:$0xf]
    %v36 = vld [vmem:[%s2] sm:$0xff]
    %v37 = vld [vmem:[%s2 + $0x8] sm:$0xff]
    %v38 = vld [vmem:[%s2 + $0x10] sm:$0xff]
    %v39 = vld [vmem:[%s2 + $0x18] sm:$0xff]
    %v40 = vld [vmem:[%s4] sm:$0xff]
    %v41 = vld [vmem:[%s4 + $0x8] sm:$0xff]
    %v42 = vld [vmem:[%s4 + $0x10] sm:$0xff]
    %v43 = vld [vmem:[%s4 + $0x18] sm:$0xff]
    %v44 = vld [vmem:[%s6] sm:$0xf]
    %v45 = vld [vmem:[%s0] sm:$0xf]
    %47 = vset.pattern.permute.xlu0 0
    %48 = vperm.xlu0 %47, %v36
    %v49 = vpop.permute.xlu0 %48
    %52 = vset.pattern.permute.xlu0 0
    %53 = vperm.xlu0 %52, %v37
    %v54 = vpop.permute.xlu0 %53
    %57 = vset.pattern.permute.xlu0 0
    %58 = vperm.xlu0 %57, %v38
    %v59 = vpop.permute.xlu0 %58
    %62 = vset.pattern.permute.xlu0 0
    %63 = vperm.xlu0 %62, %v39
    %v64 = vpop.permute.xlu0 %63
    %vm66 = vcmask 31744
    %v68 = vsel %vm66, %v27, 0
    %v71 = vsel %vm66, %v28, 0
    %v74 = vsel %vm66, %v29, 0
    %v77 = vsel %vm66, %v30, 0
    %vm79 = vcmask 1043456
    %v81 = vsel %vm79, %v45, 0
    %83 = vmatpush.msra.mxu0 0.0
    %84 = vmatpush.msra.mxu0 0.0
    %85 = vmatpush.msra.mxu0 0.0
    %86 = vmatpush.msra.mxu0 0.0
    %87 = vmatpush.msra.mxu0 0.0
    %88 = vmatpush.msra.mxu0 0.0
    %89 = vmatpush.msra.mxu0 0.0
    %90 = vmatpush.msra.mxu0 0.0
    %91 = vmatpush.msra.mxu0 0.0
    %92 = vmatpush.msra.mxu0 0.0
    %93 = vmatpush.msra.mxu0 0.0
    %94 = vmatpush.msra.mxu0 0.0
    %95 = vmatpush.msra.mxu0 0.0
    %96 = vmatpush.msra.mxu0 0.0
    %97 = vmatpush.msra.mxu0 0.0
    %98 = vmatpush.msra.mxu0 %v81
    %99 = vmatmul.f32.gmra.mxu0 %v68
    %v100 = vpop.f32.mrf.mxu0
    %v101 = vadd.f32 %v49, %v100
    %102 = vmatmul.f32.gmra.mxu0 %v71
    %v103 = vpop.f32.mrf.mxu0
    %v104 = vadd.f32 %v54, %v103
    %105 = vmatmul.f32.gmra.mxu0 %v74
    %v106 = vpop.f32.mrf.mxu0
    %v107 = vadd.f32 %v59, %v106
    %108 = vmatmul.f32.gmra.mxu0 %v77
    %v109 = vpop.f32.mrf.mxu0
    %v110 = vadd.f32 %v64, %v109
    %111 = vdwg.mxu0
    %vm112 = vcmp.gt.f32.partialorder %v101, 0.0
    %vm113 = vcmp.gt.f32.partialorder %v104, 0.0
    %vm114 = vcmp.gt.f32.partialorder %v107, 0.0
    %vm115 = vcmp.gt.f32.partialorder %v110, 0.0
    %v116 = vmul.f32 %v101, 0.01
    %v117 = vmul.f32 %v104, 0.01
    %v118 = vmul.f32 %v107, 0.01
    %v119 = vmul.f32 %v110, 0.01
    %v120 = vsel %vm112, %v101, %v116
    %v121 = vsel %vm113, %v104, %v117
    %v122 = vsel %vm114, %v107, %v118
    %v123 = vsel %vm115, %v110, %v119
    %125 = vset.pattern.permute.xlu0 0
    %126 = vperm.xlu0 %125, %v40
    %v127 = vpop.permute.xlu0 %126
    %130 = vset.pattern.permute.xlu0 0
    %131 = vperm.xlu0 %130, %v41
    %v132 = vpop.permute.xlu0 %131
    %135 = vset.pattern.permute.xlu0 0
    %136 = vperm.xlu0 %135, %v42
    %v137 = vpop.permute.xlu0 %136
    %140 = vset.pattern.permute.xlu0 0
    %141 = vperm.xlu0 %140, %v43
    %v142 = vpop.permute.xlu0 %141
    %vm144 = vcmask 261120
    %v146 = vsel %vm144, %v31, 0
    %v149 = vsel %vm144, %v32, 0
    %v152 = vsel %vm144, %v33, 0
    %v155 = vsel %vm144, %v34, 0
    %157 = vmatpush.msra.mxu0 0.0
    %158 = vmatpush.msra.mxu0 0.0
    %159 = vmatpush.msra.mxu0 0.0
    %160 = vmatpush.msra.mxu0 0.0
    %161 = vmatpush.msra.mxu0 0.0
    %162 = vmatpush.msra.mxu0 0.0
    %163 = vmatpush.msra.mxu0 0.0
    %164 = vmatpush.msra.mxu0 0.0
    %165 = vmatpush.msra.mxu0 0.0
    %166 = vmatpush.msra.mxu0 0.0
    %167 = vmatpush.msra.mxu0 0.0
    %168 = vmatpush.msra.mxu0 0.0
    %169 = vmatpush.msra.mxu0 %v123
    %170 = vmatpush.msra.mxu0 %v122
    %171 = vmatpush.msra.mxu0 %v121
    %172 = vmatpush.msra.mxu0 %v120
    %173 = vmatmul.f32.gmra.mxu0 %v146
    %v174 = vpop.f32.mrf.mxu0
    %v175 = vadd.f32 %v127, %v174
    %176 = vmatmul.f32.gmra.mxu0 %v149
    %v177 = vpop.f32.mrf.mxu0
    %v178 = vadd.f32 %v132, %v177
    %179 = vmatmul.f32.gmra.mxu0 %v152
    %v180 = vpop.f32.mrf.mxu0
    %v181 = vadd.f32 %v137, %v180
    %182 = vmatmul.f32.gmra.mxu0 %v155
    %v183 = vpop.f32.mrf.mxu0
    %v184 = vadd.f32 %v142, %v183
    %185 = vdwg.mxu0
    %vm186 = vcmp.gt.f32.partialorder %v175, 0.0
    %vm187 = vcmp.gt.f32.partialorder %v178, 0.0
    %vm188 = vcmp.gt.f32.partialorder %v181, 0.0
    %vm189 = vcmp.gt.f32.partialorder %v184, 0.0
    %v190 = vmul.f32 %v175, 0.01
    %v191 = vmul.f32 %v178, 0.01
    %v192 = vmul.f32 %v181, 0.01
    %v193 = vmul.f32 %v184, 0.01
    %v194 = vsel %vm186, %v175, %v190
    %v195 = vsel %vm187, %v178, %v191
    %v196 = vsel %vm188, %v181, %v192
    %v197 = vsel %vm189, %v184, %v193
    %199 = vset.pattern.permute.xlu0 0
    %200 = vperm.xlu0 %199, %v44
    %v201 = vpop.permute.xlu0 %200
    %v204 = vsel %vm144, %v35, 0
    %206 = vmatpush.msra.mxu0 0.0
    %207 = vmatpush.msra.mxu0 0.0
    %208 = vmatpush.msra.mxu0 0.0
    %209 = vmatpush.msra.mxu0 0.0
    %210 = vmatpush.msra.mxu0 0.0
    %211 = vmatpush.msra.mxu0 0.0
    %212 = vmatpush.msra.mxu0 0.0
    %213 = vmatpush.msra.mxu0 0.0
    %214 = vmatpush.msra.mxu0 0.0
    %215 = vmatpush.msra.mxu0 0.0
    %216 = vmatpush.msra.mxu0 0.0
    %217 = vmatpush.msra.mxu0 0.0
    %218 = vmatpush.msra.mxu0 %v197
    %219 = vmatpush.msra.mxu0 %v196
    %220 = vmatpush.msra.mxu0 %v195
    %221 = vmatpush.msra.mxu0 %v194
    %222 = vmatmul.f32.gmra.mxu0 %v204
    %v223 = vpop.f32.mrf.mxu0
    %v224 = vadd.f32 %v201, %v223
    %225 = vdwg.mxu0
    %226 = vst [vmem:[#allocation2] sm:$0xf] %v224
    // Predicated region
    $region30: #{tpu_custom_call.1} parent=1 // pred_check
      _
    $region31: #{tpu_custom_call.1} parent=1 // pred_check_branch
      %228 = sbr.rel (0) target = $region33
    $region32: #{tpu_custom_call.1} parent=1 // pred_region
      %230 = vsyncadd [#allocation3], 0
      %s232 = sshll.u32 [#allocation2], 4
      %s233 = int_to_ptr.vmem [resolvable:$true] %s232
      %s234 = sshll.u32 %s7, 4
      %s235 = int_to_ptr.hbm [resolvable:$true] %s234
      %237 = dma.vmem_to_hbm [thread:$0]  %s233, 64, %s235, [#allocation3]
    $region33: #{tpu_custom_call.1} parent=1 // pred_fallthru
      _
    // Predicated region
    $region34: #{tpu_custom_call.1} parent=1 // pred_check
      _
    $region35: #{tpu_custom_call.1} parent=1 // pred_check_branch
      %239 = sbr.rel (0) target = $region37
    $region36: #{tpu_custom_call.1} parent=1 // pred_region
      %241 = dma.done [#allocation3], 64
    $region37: #{tpu_custom_call.1} parent=1 // pred_fallthru
      _
    %242 = vsyncpa [#allocation3], 1

</llo_original>
